<compile_context>
chip_gen: v7x
topology: tpu7x:2x2x1
jax: 0.10.0
libtpu: 0.0.40
codegen_flags: <defaults>
</compile_context>

<pallas_src>
import functools

import jax
import jax.numpy as jnp
from jax.experimental import pallas as pl
from jax.experimental.pallas import tpu as pltpu

EPS = 1e-5
LANE = 128
_RESIDENT_W_BYTES = 4 * 1024 * 1024    # keep 1x1 weights VMEM-resident up to this


# ----------------------------------------------------------------------------
# small helpers
# ----------------------------------------------------------------------------
def _round_up(n, m):
    return ((n + m - 1) // m) * m


_VMEM_LIMIT_CACHE = []


def _vmem_limit_bytes():
    """48 MiB on 128-MiB parts (v5e/v6e), ~38 MiB on 64-MiB parts (v7x)."""
    if not _VMEM_LIMIT_CACHE:
        try:
            cap = int(pltpu.get_tpu_info().vmem_capacity_bytes)
        except Exception:
            cap = 128 * 1024 * 1024
        _VMEM_LIMIT_CACHE.append(
            max(16 * 1024 * 1024, min(48 * 1024 * 1024, (cap * 3) // 5)))
    return _VMEM_LIMIT_CACHE[0]


def _pick_row_tile(p):
    """Largest multiple-of-8 divisor of p that is <= 1024 (None if p % 8)."""
    if p % 8 != 0:
        return None
    t = min(p, 1024)
    t -= t % 8
    while t >= 8:
        if p % t == 0:
            return t
        t -= 8
    return None


def _pick_k_tile(k):
    for t in (512, 256, 128):
        if k % t == 0:
            return t
    return k


def _pad_last(a, size):
    pad = size - a.shape[-1]
    if pad == 0:
        return a
    cfg = [(0, 0)] * (a.ndim - 1) + [(0, pad)]
    return jnp.pad(a, cfg)


def _pad_last2(a, rows, cols):
    pr = rows - a.shape[-2]
    pc = cols - a.shape[-1]
    if pr == 0 and pc == 0:
        return a
    cfg = [(0, 0)] * (a.ndim - 2) + [(0, pr), (0, pc)]
    return jnp.pad(a, cfg)


def _grouped_stats(h, row0, boundary, tm, valid_rows):
    """(8, C): rows 0/1 = per-group sums, rows 2/3 = per-group sums of squares.

    Group 'a' = global rows < boundary, group 'b' = the rest; rows >= valid_rows
    (zero-padding rows) are excluded from both groups.  Uses two small MXU
    matmuls with 0/1 selector matrices (avoids XLU sublane reductions).
    """
    col = row0 + jax.lax.broadcasted_iota(jnp.int32, (1, tm), 1)
    valid = col < valid_rows
    a_f = jnp.logical_and(col < boundary, valid).astype(jnp.float32)
    b_f = jnp.logical_and(col >= boundary, valid).astype(jnp.float32)
    r8 = jax.lax.broadcasted_iota(jnp.int32, (8, 1), 0)
    sel_s = jnp.where(r8 == 0, a_f, 0.0) + jnp.where(r8 == 1, b_f, 0.0)
    sel_q = jnp.where(r8 == 2, a_f, 0.0) + jnp.where(r8 == 3, b_f, 0.0)
    return (jnp.dot(sel_s, h, preferred_element_type=jnp.float32)
            + jnp.dot(sel_q, h * h, preferred_element_type=jnp.float32))


def _bn_select(sc_ref, sh_ref, i, tm, boundary, valid_rows):
    """Pick per-group scale/shift; skip the per-row select when the whole tile
    is statically on one side of the split boundary."""
    if boundary >= valid_rows:                 # no split: everything in group a
        return sc_ref[0:1, :], sh_ref[0:1, :]
    if boundary <= 0:
        return sc_ref[1:2, :], sh_ref[1:2, :]
    if boundary % tm == 0:                     # tile-aligned boundary: scalar select
        in_a = (i * tm) < boundary
    else:                                      # straddling: per-row select
        row = i * tm + jax.lax.broadcasted_iota(jnp.int32, (tm, 1), 0)
        in_a = row < boundary
    scale = jnp.where(in_a, sc_ref[0:1, :], sc_ref[1:2, :])
    shift = jnp.where(in_a, sh_ref[0:1, :], sh_ref[1:2, :])
    return scale, shift


# ----------------------------------------------------------------------------
# kernel 1 & 3: tiled 1x1 conv (matmul) with optional fused BN-apply prologue
# and fused per-group BN statistics epilogue
# ----------------------------------------------------------------------------
def _matmul_bn_kernel(x_ref, w_ref, sc_ref, sh_ref, o_ref, st_ref, acc_ref,
                      *, tm, tk, kt, w_resident, bn_prologue,
                      boundary_in, boundary_out, valid_rows):
    i = pl.program_id(0)
    k = pl.program_id(1)

    x = x_ref[...]
    if bn_prologue:
        scale, shift = _bn_select(sc_ref, sh_ref, i, tm, boundary_in, valid_rows)
        x = jnp.maximum(x.astype(jnp.float32) * scale + shift, 0.0)
        x = x.astype(w_ref.dtype)

    @pl.when(k == 0)
    def _init():
        acc_ref[...] = jnp.zeros_like(acc_ref)

    if w_resident and kt > 1:
        w_blk = w_ref[pl.ds(pl.multiple_of(k * tk, tk), tk), :]
    else:
        w_blk = w_ref[...] if (w_resident or not w_resident) else None
        if w_resident and kt == 1:
            w_blk = w_ref[...]
    acc_ref[...] += jnp.dot(x, w_blk, preferred_element_type=jnp.float32)

    @pl.when(k == kt - 1)
    def _finalize():
        h = acc_ref[...]
        o_ref[...] = h.astype(o_ref.dtype)
        st_ref[...] = _grouped_stats(h, i * tm, boundary_out, tm, valid_rows)


def _conv1x1_bn(x, w, sc_in, sh_in, *, bn_prologue, boundary_in, boundary_out,
                valid_rows, out_dtype):
    p, kdim = x.shape
    nout = w.shape[1]
    tm = _pick_row_tile(p)
    assert tm is not None, "row count must be a multiple of 8 (caller pads)"
    tk = _pick_k_tile(kdim)
    gi, kt = p // tm, kdim // tk

    # Keep the whole (K, Cout) weight VMEM-resident (DMA'd once) unless it is
    # too large, in which case fall back to k-tiled weight streaming.
    w_resident = kdim * nout * jnp.dtype(w.dtype).itemsize <= _RESIDENT_W_BYTES
    if w_resident:
        w_spec = pl.BlockSpec((kdim, nout), lambda i, k: (0, 0))
    else:
        w_spec = pl.BlockSpec((tk, nout), lambda i, k: (k, 0))

    kern = functools.partial(
        _matmul_bn_kernel, tm=tm, tk=tk, kt=kt, w_resident=w_resident,
        bn_prologue=bn_prologue, boundary_in=boundary_in,
        boundary_out=boundary_out, valid_rows=valid_rows)

    itemsize = jnp.dtype(out_dtype).itemsize
    cost = pl.CostEstimate(
        flops=2 * p * kdim * nout + (4 * p * kdim if bn_prologue else 0),
        transcendentals=0,
        bytes_accessed=(p * kdim + kdim * nout + p * nout) * itemsize)

    h, st = pl.pallas_call(
        kern,
        grid=(gi, kt),                              # reduction (K) axis last
        in_specs=[
            pl.BlockSpec((tm, tk), lambda i, k: (i, k)),
            w_spec,
            pl.BlockSpec((2, tk), lambda i, k: (0, k)),
            pl.BlockSpec((2, tk), lambda i, k: (0, k)),
        ],
        out_specs=[
            pl.BlockSpec((tm, nout), lambda i, k: (i, 0)),
            pl.BlockSpec((8, nout), lambda i, k: (i, 0)),   # per-tile partial stats
        ],
        out_shape=[
            jax.ShapeDtypeStruct((p, nout), out_dtype),
            jax.ShapeDtypeStruct((gi * 8, nout), jnp.float32),
        ],
        scratch_shapes=[pltpu.VMEM((tm, nout), jnp.float32)],
        compiler_params=pltpu.CompilerParams(
            dimension_semantics=("parallel", "arbitrary"),
            vmem_limit_bytes=_vmem_limit_bytes()),
        cost_estimate=cost,
    )(x, w, sc_in, sh_in)
    return h, st


# ----------------------------------------------------------------------------
# kernel 2: per-image 3x3 conv (no im2col) with fused BN1-apply(+ReLU)
# prologue and fused per-group BN2 statistics epilogue
# ----------------------------------------------------------------------------
def _conv3x3_bn_kernel(h1_ref, w2_ref, sc_ref, sh_ref, h2_ref, st_ref,
                       *, height, width, n_a_apply, n_a_stats, valid_rows):
    n = pl.program_id(0)
    r = height * width
    c = h1_ref.shape[1]
    cout = w2_ref.shape[2]
    cdt = w2_ref.dtype                          # compute dtype (bf16 or f32)

    # BN1 apply + ReLU (per-image group selection); cast once to compute dtype
    # so the padded slabs and all 9 windows are half-width in bf16 mode.
    is_a = n < n_a_apply
    scale = jnp.where(is_a, sc_ref[0:1, :], sc_ref[1:2, :])
    shift = jnp.where(is_a, sh_ref[0:1, :], sh_ref[1:2, :])
    x = h1_ref[...].astype(jnp.float32)                      # (R, C)
    a = jnp.maximum(x * scale + shift, 0.0).astype(cdt)

    # column index of every input row within its image row
    r_iota = jax.lax.broadcasted_iota(jnp.int32, (r, 1), 0)
    if (width & (width - 1)) == 0:
        gcol = jnp.bitwise_and(r_iota, width - 1)
    else:
        gcol = r_iota % width

    # Two pre-masked copies handle the left/right image edges for the dx=-1 /
    # dx=+1 taps (replaces six in-loop whole-tile selects with two).
    zero = jnp.zeros_like(a)
    a_l = jnp.where(gcol != width - 1, a, zero)   # feeds dx = -1 taps
    a_r = jnp.where(gcol != 0, a, zero)           # feeds dx = +1 taps

    # zero "ring" padding in the flattened row space
    pad = _round_up(width + 1, 8)
    zeros = jnp.zeros((pad, c), cdt)
    ap = jnp.concatenate([zeros, a, zeros], axis=0)
    ap_l = jnp.concatenate([zeros, a_l, zeros], axis=0)
    ap_r = jnp.concatenate([zeros, a_r, zeros], axis=0)
    # TODO(synk): spatially chunk (grid over row blocks with a +/- (width+1)
    # halo) so these slabs and the f32 accumulator stay bounded for very large
    # H*W*C images on v7x's 64 MiB VMEM, and batch several tiny images per
    # step so the MXU sees M >= 256 rows.

    acc = jnp.zeros((r, cout), jnp.float32)
    for dy in (-1, 0, 1):
        for dx in (-1, 0, 1):
            src = ap if dx == 0 else (ap_l if dx == -1 else ap_r)
            off = dy * width + dx
            tap = (dy + 1) * 3 + (dx + 1)
            window = src[pad + off:pad + off + r, :]          # static slice
            acc = acc + jnp.dot(window, w2_ref[tap],
                                preferred_element_type=jnp.float32)

    h2_ref[...] = acc.astype(h2_ref.dtype)
    st_ref[...] = _grouped_stats(acc, n * r, n_a_stats * r, r, valid_rows)


def _conv3x3_bn(h1, w2, sc_in, sh_in, *, num_images, height, width,
                n_a_apply, n_a_stats, out_dtype):
    _, c = h1.shape
    r = height * width
    n = num_images
    cout = w2.shape[2]
    assert n == 1 or r % 8 == 0, "per-image row block needs H*W % 8 == 0"

    kern = functools.partial(_conv3x3_bn_kernel, height=height, width=width,
                             n_a_apply=n_a_apply, n_a_stats=n_a_stats,
                             valid_rows=n * r)
    itemsize = jnp.dtype(out_dtype).itemsize
    cost = pl.CostEstimate(
        flops=2 * 9 * n * r * c * cout,
        transcendentals=0,
        bytes_accessed=(n * r * c + 9 * c * cout + n * r * cout) * itemsize)

    h2, st = pl.pallas_call(
        kern,
        grid=(n,),
        in_specs=[
            pl.BlockSpec((r, c), lambda i: (i, 0)),
            pl.BlockSpec((9, c, cout), lambda i: (0, 0, 0)),   # VMEM-resident
            pl.BlockSpec((2, c), lambda i: (0, 0)),
            pl.BlockSpec((2, c), lambda i: (0, 0)),
        ],
        out_specs=[
            pl.BlockSpec((r, cout), lambda i: (i, 0)),
            pl.BlockSpec((8, cout), lambda i: (i, 0)),
        ],
        out_shape=[
            jax.ShapeDtypeStruct((n * r, cout), out_dtype),
            jax.ShapeDtypeStruct((n * 8, cout), jnp.float32),
        ],
        compiler_params=pltpu.CompilerParams(
            dimension_semantics=("parallel",),
            vmem_limit_bytes=_vmem_limit_bytes()),
        cost_estimate=cost,
    )(h1, w2, sc_in, sh_in)
    return h2, st


# ----------------------------------------------------------------------------
# kernel 4: fused BN3-apply + residual add + ReLU (bandwidth-bound epilogue;
# residual and output streams stay in the compute dtype)
# ----------------------------------------------------------------------------
def _bn_residual_relu_kernel(h_ref, r_ref, sc_ref, sh_ref, o_ref,
                             *, tm, boundary, valid_rows):
    i = pl.program_id(0)
    scale, shift = _bn_select(sc_ref, sh_ref, i, tm, boundary, valid_rows)
    y = (h_ref[...].astype(jnp.float32) * scale + shift
         + r_ref[...].astype(jnp.float32))
    o_ref[...] = jnp.maximum(y, 0.0).astype(o_ref.dtype)


def _bn_residual_relu(h, res, sc, sh, *, boundary, valid_rows, out_dtype):
    p, c = h.shape
    tm = _pick_row_tile(p)
    assert tm is not None
    gi = p // tm
    kern = functools.partial(_bn_residual_relu_kernel, tm=tm,
                             boundary=boundary, valid_rows=valid_rows)
    itemsize = jnp.dtype(out_dtype).itemsize
    cost = pl.CostEstimate(flops=4 * p * c, transcendentals=0,
                           bytes_accessed=3 * p * c * itemsize)
    return pl.pallas_call(
        kern,
        grid=(gi,),
        in_specs=[
            pl.BlockSpec((tm, c), lambda i: (i, 0)),
            pl.BlockSpec((tm, c), lambda i: (i, 0)),
            pl.BlockSpec((2, c), lambda i: (0, 0)),
            pl.BlockSpec((2, c), lambda i: (0, 0)),
        ],
        out_specs=pl.BlockSpec((tm, c), lambda i: (i, 0)),
        out_shape=jax.ShapeDtypeStruct((p, c), out_dtype),
        compiler_params=pltpu.CompilerParams(
            dimension_semantics=("parallel",),
            vmem_limit_bytes=_vmem_limit_bytes()),
        cost_estimate=cost,
    )(h, res, sc, sh)


# ----------------------------------------------------------------------------
# SwitchBatchNorm2d glue: static routing + per-channel scale/shift from stats
# ----------------------------------------------------------------------------
def _select_banks(bn_padded, switch, mode):
    if switch == 1:
        return bn_padded['sharable'], bn_padded['sharable'], False
    if switch == 0:
        if mode == 0:
            return bn_padded['visible'], bn_padded['thermal'], True
        if mode == 1:
            return bn_padded['visible'], bn_padded['visible'], False
        if mode == 2:
            return bn_padded['thermal'], bn_padded['thermal'], False
        raise ValueError('Invalid mode: {}'.format(mode))
    raise ValueError('Invalid switch value: {}, must be 0 or 1.'.format(switch))


def _bn_scale_shift(st, bank_a, bank_b, count_a, count_b):
    c = st.shape[-1]
    s = st.reshape(-1, 8, c).sum(axis=0)    # reduce the per-tile partial stats

    def one(sm, sq, cnt, gamma, beta):
        cnt = max(int(cnt), 1)
        mean = sm / cnt
        var = jnp.maximum(sq / cnt - mean * mean, 0.0)   # clamp E[x^2]-m^2 cancellation
        inv = jax.lax.rsqrt(var + EPS)
        scale = gamma * inv
        shift = beta - mean * scale
        return scale, shift

    sa, ha = one(s[0], s[2], count_a, *bank_a)
    sb, hb = one(s[1], s[3], count_b, *bank_b)
    return jnp.stack([sa, sb]), jnp.stack([ha, hb])


# ----------------------------------------------------------------------------
# BottleneckSwitchBN forward (stride=1, downsample=None)
# ----------------------------------------------------------------------------
def bottleneck_forward(x_nchw, params, config, mode=0, compute_dtype=jnp.bfloat16):
    # compute_dtype=bfloat16 (default) halves HBM traffic / doubles MXU rate on
    # v6e/v7x; pass jnp.float32 to match the PyTorch module's numerics exactly.
    n, cin, height, width = x_nchw.shape
    planes = params['conv1'].shape[0]
    outp = planes * 4
    assert cin == outp, 'residual add requires inplanes == planes * expansion'
    # TODO(synk): downsample branch / stride>1 not implemented (module is used
    # here with downsample=None, stride=1).
    if any(s == 0 for s in config) and mode == 0:
        assert n % 2 == 0, 'split BN (switch=0, mode=0) needs an even batch'

    cin_p = _round_up(cin, LANE)
    mid_p = _round_up(planes, LANE)
    out_p = _round_up(outp, LANE)
    r = height * width
    p_true = n * r

    # Pad the flattened row count when N*H*W has no healthy row-tile divisor,
    # so the matmul/epilogue kernels never degrade to a single giant block.
    probe = _pick_row_tile(p_true)
    p = p_true if (probe is not None and probe >= 64) else _round_up(p_true, 256)

    # NCHW -> flattened NHWC rows, channels zero-padded to the 128-lane width
    x_rows = jnp.transpose(x_nchw, (0, 2, 3, 1)).astype(jnp.float32).reshape(p_true, cin)
    x_rows = _pad_last(x_rows, cin_p)
    if p > p_true:
        x_rows = jnp.pad(x_rows, ((0, p - p_true), (0, 0)))
    x_in = x_rows.astype(compute_dtype)

    w1 = _pad_last2(jnp.transpose(params['conv1'][:, :, 0, 0], (1, 0)),
                    cin_p, mid_p).astype(compute_dtype)
    w2 = jnp.transpose(params['conv2'], (2, 3, 1, 0)).reshape(9, planes, planes)
    w2 = _pad_last2(w2, mid_p, mid_p).astype(compute_dtype)
    w3 = _pad_last2(jnp.transpose(params['conv3'][:, :, 0, 0], (1, 0)),
                    mid_p, out_p).astype(compute_dtype)

    def pad_bank(bank, c_pad):
        return {k: (_pad_last(g, c_pad), _pad_last(b, c_pad))
                for k, (g, b) in bank.items()}

    bn1 = pad_bank(params['bn1'], mid_p)
    bn2 = pad_bank(params['bn2'], mid_p)
    bn3 = pad_bank(params['bn3'], out_p)

    bank1_a, bank1_b, split1 = _select_banks(bn1, config[0], mode)
    bank2_a, bank2_b, split2 = _select_banks(bn2, config[1], mode)
    bank3_a, bank3_b, split3 = _select_banks(bn3, config[2], mode)

    def row_bound(split):
        return (n // 2) * r if split else p_true

    def img_bound(split):
        return n // 2 if split else n

    dummy = jnp.zeros((2, cin_p), jnp.float32)

    # 1) conv1 (1x1) + BN1 statistics
    h1, st1 = _conv1x1_bn(x_in, w1, dummy, dummy, bn_prologue=False,
                          boundary_in=p_true, boundary_out=row_bound(split1),
                          valid_rows=p_true, out_dtype=compute_dtype)
    sc1, sh1 = _bn_scale_shift(st1, bank1_a, bank1_b,
                               row_bound(split1), p_true - row_bound(split1))

    # 2) BN1-apply + ReLU + conv2 (3x3) + BN2 statistics
    h2, st2 = _conv3x3_bn(h1, w2, sc1, sh1, num_images=n, height=height,
                          width=width, n_a_apply=img_bound(split1),
                          n_a_stats=img_bound(split2), out_dtype=compute_dtype)
    sc2, sh2 = _bn_scale_shift(st2, bank2_a, bank2_b,
                               row_bound(split2), p_true - row_bound(split2))
    if p > p_true:
        h2 = jnp.pad(h2, ((0, p - p_true), (0, 0)))

    # 3) BN2-apply + ReLU + conv3 (1x1) + BN3 statistics
    h3, st3 = _conv1x1_bn(h2, w3, sc2, sh2, bn_prologue=True,
                          boundary_in=row_bound(split2),
                          boundary_out=row_bound(split3),
                          valid_rows=p_true, out_dtype=compute_dtype)
    sc3, sh3 = _bn_scale_shift(st3, bank3_a, bank3_b,
                               row_bound(split3), p_true - row_bound(split3))

    # 4) BN3-apply + residual add + final ReLU
    out = _bn_residual_relu(h3, x_in, sc3, sh3, boundary=row_bound(split3),
                            valid_rows=p_true, out_dtype=compute_dtype)

    out = out[:p_true, :outp].reshape(n, height, width, outp)
    # TODO(synk): emit the depadded NCHW layout directly from kernel 4 to save
    # this XLA slice+transpose round trip.
    return jnp.transpose(out, (0, 3, 1, 2)).astype(jnp.float32)


# ----------------------------------------------------------------------------
# Pure-JAX reference for verification
# ----------------------------------------------------------------------------
def reference_forward(x_nchw, params, config, mode=0):
    def conv(x, w, pad=0):
        return jax.lax.conv_general_dilated(
            x, w, (1, 1), [(pad, pad), (pad, pad)],
            dimension_numbers=('NCHW', 'OIHW', 'NCHW'))

    def bn_train(x, gamma, beta):
        mean = x.mean(axis=(0, 2, 3), keepdims=True)
        var = ((x - mean) ** 2).mean(axis=(0, 2, 3), keepdims=True)
        return ((x - mean) * jax.lax.rsqrt(var + EPS)
                * gamma[None, :, None, None] + beta[None, :, None, None])

    def sbn(x, p, switch, with_relu):
        if switch == 1:
            y = bn_train(x, *p['sharable'])
        else:
            if mode == 0:
                half = x.shape[0] // 2
                y = jnp.concatenate([bn_train(x[:half], *p['visible']),
                                     bn_train(x[half:], *p['thermal'])], axis=0)
            elif mode == 1:
                y = bn_train(x, *p['visible'])
            else:
                y = bn_train(x, *p['thermal'])
        return jnp.maximum(y, 0.0) if with_relu else y

    out = conv(x_nchw, params['conv1'])
    out = sbn(out, params['bn1'], config[0], True)
    out = conv(out, params['conv2'], pad=1)
    out = sbn(out, params['bn2'], config[1], True)
    out = conv(out, params['conv3'])
    out = sbn(out, params['bn3'], config[2], False)
    return jnp.maximum(out + x_nchw, 0.0)


# ----------------------------------------------------------------------------
# Main
# ----------------------------------------------------------------------------
def _make_bn_params(key, c):
    ks = jax.random.split(key, 6)

    def gb(ka, kb):
        return (1.0 + 0.1 * jax.random.normal(ka, (c,), jnp.float32),
                0.1 * jax.random.normal(kb, (c,), jnp.float32))

    return {'visible': gb(ks[0], ks[1]),
            'thermal': gb(ks[2], ks[3]),
            'sharable': gb(ks[4], ks[5])}


if __name__ == "__main__":
    key = jax.random.PRNGKey(0)
    batch, inplanes, planes, height, width = 2, 16, 4, 8, 8   # inplanes == planes*4
    (k_x, k_x2, k_x3, k_c1, k_c2, k_c3, k_b1, k_b2, k_b3) = jax.random.split(key, 9)

    params = {
        'conv1': 0.1 * jax.random.normal(k_c1, (planes, inplanes, 1, 1), jnp.float32),
        'conv2': 0.1 * jax.random.normal(k_c2, (planes, planes, 3, 3), jnp.float32),
        'conv3': 0.1 * jax.random.normal(k_c3, (planes * 4, planes, 1, 1), jnp.float32),
        'bn1': _make_bn_params(k_b1, planes),
        'bn2': _make_bn_params(k_b2, planes),
        'bn3': _make_bn_params(k_b3, planes * 4),
    }
    x = jax.random.normal(k_x, (batch, inplanes, height, width), jnp.float32)
    # awkward row count (2*4*4 = 32 rows) exercises the padded-row path
    x_small = jax.random.normal(k_x2, (batch, inplanes, 4, 4), jnp.float32)
    # larger batch exercises multi-row-tile grids + tile-aligned split boundary
    x_big = jax.random.normal(k_x3, (8, inplanes, height, width), jnp.float32)

    checks = [
        (x, [0, 1, 0], 0, jnp.float32, 3e-4),   # bn1/bn3 split on batch halves
        (x, [1, 0, 1], 2, jnp.float32, 3e-4),   # sharable / thermal-only (uniform)
        (x, [0, 1, 0], 0, jnp.bfloat16, 2e-1),  # bf16 activations, f32 accum/stats
        (x_small, [0, 0, 0], 0, jnp.float32, 3e-4),
        (x_big, [0, 0, 0], 0, jnp.float32, 3e-4),
    ]
    for xi, config, mode, cdt, tol in checks:
        out = jax.block_until_ready(
            bottleneck_forward(xi, params, list(config), mode, compute_dtype=cdt))
        ref = jax.block_until_ready(reference_forward(xi, params, list(config), mode))
        assert out.shape == ref.shape
        err = float(jnp.max(jnp.abs(out - ref)))
        assert err <= tol, (
            "mismatch vs reference for config={} mode={} dtype={}: max abs err {}"
            .format(config, mode, jnp.dtype(cdt).name, err))

    print("KERNEL_OK")
</pallas_src>

<mosaic_0001>
module attributes {stable_mosaic.version = 11 : i64} {
  func.func @_matmul_bn_kernel(%arg0: i32, %arg1: i32, %arg2: memref<128x128xf32, #tpu.memory_space<vmem>>, %arg3: memref<128x128xf32, #tpu.memory_space<vmem>>, %arg4: memref<2x128xf32, #tpu.memory_space<vmem>>, %arg5: memref<2x128xf32, #tpu.memory_space<vmem>>, %arg6: memref<128x128xf32, #tpu.memory_space<vmem>>, %arg7: memref<8x128xf32, #tpu.memory_space<vmem>>, %arg8: memref<128x128xf32, #tpu.memory_space<vmem>>) attributes {dimension_semantics = [#tpu.dimension_semantics<parallel>, #tpu.dimension_semantics<arbitrary>], iteration_bounds = array<i64: 1, 1>, scalar_prefetch = 0 : i64, scratch_operands = 1 : i64, tpu.core_type = #tpu.core_type<tc>, window_params = [{transform_indices = @transform_0, window_bounds = array<i64: 128, 128>}, {pipeline_mode = #tpu.pipeline_mode<synchronous>, transform_indices = @transform_1, window_bounds = array<i64: 128, 128>}, {transform_indices = @transform_2, window_bounds = array<i64: 2, 128>}, {transform_indices = @transform_3, window_bounds = array<i64: 2, 128>}, {transform_indices = @transform_4, window_bounds = array<i64: 128, 128>}, {transform_indices = @transform_5, window_bounds = array<i64: 8, 128>}]} {
    %c0 = arith.constant 0 : index
    %c0_0 = arith.constant 0 : index
    %0 = vector.load %arg2[%c0, %c0_0] : memref<128x128xf32, #tpu.memory_space<vmem>>, vector<128x128xf32>
    %c0_i32 = arith.constant 0 : i32
    %1 = arith.cmpi eq, %arg1, %c0_i32 : i32
    %2 = arith.extui %1 : i1 to i32
    %c0_i32_1 = arith.constant 0 : i32
    %3 = arith.cmpi ne, %2, %c0_i32_1 : i32
    scf.if %3 {
      %cst_10 = arith.constant 0.000000e+00 : f32
      %12 = vector.broadcast %cst_10 : f32 to vector<128x128xf32>
      %c0_11 = arith.constant 0 : index
      %c0_12 = arith.constant 0 : index
      %13 = vector.load %arg8[%c0_11, %c0_12] : memref<128x128xf32, #tpu.memory_space<vmem>>, vector<128x128xf32>
      tpu.vector_store %arg8[%c0_11, %c0_12], %12 {strides = array<i32>} : memref<128x128xf32, #tpu.memory_space<vmem>>, vector<128x128xf32>,
    } else {
    }
    %c0_2 = arith.constant 0 : index
    %c0_3 = arith.constant 0 : index
    %4 = vector.load %arg3[%c0_2, %c0_3] : memref<128x128xf32, #tpu.memory_space<vmem>>, vector<128x128xf32>
    %c0_4 = arith.constant 0 : index
    %c0_5 = arith.constant 0 : index
    %5 = vector.load %arg8[%c0_4, %c0_5] : memref<128x128xf32, #tpu.memory_space<vmem>>, vector<128x128xf32>
    %cst = arith.constant dense<0.000000e+00> : vector<128x128xf32>
    %6 = tpu.matmul %0, %4, %cst {dimension_numbers = #tpu.dot_dimension_numbers<[1], [0], [0], [1], [0, 0, 1, 1], [], []>} : vector<128x128xf32>, vector<128x128xf32>, vector<128x128xf32> -> vector<128x128xf32>
    %7 = arith.addf %5, %6 : vector<128x128xf32>
    %c0_6 = arith.constant 0 : index
    %c0_7 = arith.constant 0 : index
    %8 = vector.load %arg8[%c0_6, %c0_7] : memref<128x128xf32, #tpu.memory_space<vmem>>, vector<128x128xf32>
    tpu.vector_store %arg8[%c0_6, %c0_7], %7 {strides = array<i32>} : memref<128x128xf32, #tpu.memory_space<vmem>>, vector<128x128xf32>,
    %c0_i32_8 = arith.constant 0 : i32
    %9 = arith.cmpi eq, %arg1, %c0_i32_8 : i32
    %10 = arith.extui %9 : i1 to i32
    %c0_i32_9 = arith.constant 0 : i32
    %11 = arith.cmpi ne, %10, %c0_i32_9 : i32
    scf.if %11 {
      %c0_10 = arith.constant 0 : index
      %c0_11 = arith.constant 0 : index
      %12 = vector.load %arg8[%c0_10, %c0_11] : memref<128x128xf32, #tpu.memory_space<vmem>>, vector<128x128xf32>
      %c0_12 = arith.constant 0 : index
      %c0_13 = arith.constant 0 : index
      %13 = vector.load %arg6[%c0_12, %c0_13] : memref<128x128xf32, #tpu.memory_space<vmem>>, vector<128x128xf32>
      tpu.vector_store %arg6[%c0_12, %c0_13], %12 {strides = array<i32>} : memref<128x128xf32, #tpu.memory_space<vmem>>, vector<128x128xf32>,
      %c128_i32 = arith.constant 128 : i32
      %14 = arith.muli %arg0, %c128_i32 : i32
      %15 = tpu.iota {dimensions = array<i32: 1>} : vector<1x128xi32>
      %16 = vector.broadcast %14 : i32 to vector<1x128xi32>
      %17 = arith.addi %16, %15 : vector<1x128xi32>
      %c128_i32_14 = arith.constant 128 : i32
      %18 = vector.broadcast %c128_i32_14 : i32 to vector<1x128xi32>
      %19 = arith.cmpi slt, %17, %18 : vector<1x128xi32>
      %c64_i32 = arith.constant 64 : i32
      %20 = vector.broadcast %c64_i32 : i32 to vector<1x128xi32>
      %21 = arith.cmpi slt, %17, %20 : vector<1x128xi32>
      %22 = arith.andi %21, %19 : vector<1x128xi1>
      %23 = arith.extui %22 : vector<1x128xi1> to vector<1x128xi32>
      %24 = arith.sitofp %23 : vector<1x128xi32> to vector<1x128xf32>
      %c64_i32_15 = arith.constant 64 : i32
      %25 = vector.broadcast %c64_i32_15 : i32 to vector<1x128xi32>
      %26 = arith.cmpi sge, %17, %25 : vector<1x128xi32>
      %27 = arith.andi %26, %19 : vector<1x128xi1>
      %28 = arith.extui %27 : vector<1x128xi1> to vector<1x128xi32>
      %29 = arith.sitofp %28 : vector<1x128xi32> to vector<1x128xf32>
      %30 = tpu.iota {dimensions = array<i32: 0>} : vector<8x1xi32>
      %c0_i32_16 = arith.constant 0 : i32
      %31 = vector.broadcast %c0_i32_16 : i32 to vector<8x1xi32>
      %32 = arith.cmpi eq, %30, %31 : vector<8x1xi32>
      %cst_17 = arith.constant 0.000000e+00 : f32
      %33 = vector.shape_cast %32 : vector<8x1xi1> to vector<8x1xi1>
      %34 = vector.broadcast %33 : vector<8x1xi1> to vector<8x128xi1>
      %35 = vector.shape_cast %24 : vector<1x128xf32> to vector<1x128xf32>
      %36 = vector.broadcast %35 : vector<1x128xf32> to vector<8x128xf32>
      %37 = vector.broadcast %cst_17 : f32 to vector<8x128xf32>
      %38 = arith.select %34, %36, %37 : vector<8x128xi1>, vector<8x128xf32>
      %c1_i32 = arith.constant 1 : i32
      %39 = vector.broadcast %c1_i32 : i32 to vector<8x1xi32>
      %40 = arith.cmpi eq, %30, %39 : vector<8x1xi32>
      %cst_18 = arith.constant 0.000000e+00 : f32
      %41 = vector.shape_cast %40 : vector<8x1xi1> to vector<8x1xi1>
      %42 = vector.broadcast %41 : vector<8x1xi1> to vector<8x128xi1>
      %43 = vector.shape_cast %29 : vector<1x128xf32> to vector<1x128xf32>
      %44 = vector.broadcast %43 : vector<1x128xf32> to vector<8x128xf32>
      %45 = vector.broadcast %cst_18 : f32 to vector<8x128xf32>
      %46 = arith.select %42, %44, %45 : vector<8x128xi1>, vector<8x128xf32>
      %47 = arith.addf %38, %46 : vector<8x128xf32>
      %c2_i32 = arith.constant 2 : i32
      %48 = vector.broadcast %c2_i32 : i32 to vector<8x1xi32>
      %49 = arith.cmpi eq, %30, %48 : vector<8x1xi32>
      %cst_19 = arith.constant 0.000000e+00 : f32
      %50 = vector.shape_cast %49 : vector<8x1xi1> to vector<8x1xi1>
      %51 = vector.broadcast %50 : vector<8x1xi1> to vector<8x128xi1>
      %52 = vector.shape_cast %24 : vector<1x128xf32> to vector<1x128xf32>
      %53 = vector.broadcast %52 : vector<1x128xf32> to vector<8x128xf32>
      %54 = vector.broadcast %cst_19 : f32 to vector<8x128xf32>
      %55 = arith.select %51, %53, %54 : vector<8x128xi1>, vector<8x128xf32>
      %c3_i32 = arith.constant 3 : i32
      %56 = vector.broadcast %c3_i32 : i32 to vector<8x1xi32>
      %57 = arith.cmpi eq, %30, %56 : vector<8x1xi32>
      %cst_20 = arith.constant 0.000000e+00 : f32
      %58 = vector.shape_cast %57 : vector<8x1xi1> to vector<8x1xi1>
      %59 = vector.broadcast %58 : vector<8x1xi1> to vector<8x128xi1>
      %60 = vector.shape_cast %29 : vector<1x128xf32> to vector<1x128xf32>
      %61 = vector.broadcast %60 : vector<1x128xf32> to vector<8x128xf32>
      %62 = vector.broadcast %cst_20 : f32 to vector<8x128xf32>
      %63 = arith.select %59, %61, %62 : vector<8x128xi1>, vector<8x128xf32>
      %64 = arith.addf %55, %63 : vector<8x128xf32>
      %cst_21 = arith.constant dense<0.000000e+00> : vector<8x128xf32>
      %65 = tpu.matmul %47, %12, %cst_21 {dimension_numbers = #tpu.dot_dimension_numbers<[1], [0], [0], [1], [0, 0, 1, 1], [], []>} : vector<8x128xf32>, vector<128x128xf32>, vector<8x128xf32> -> vector<8x128xf32>
      %66 = arith.mulf %12, %12 : vector<128x128xf32>
      %cst_22 = arith.constant dense<0.000000e+00> : vector<8x128xf32>
      %67 = tpu.matmul %64, %66, %cst_22 {dimension_numbers = #tpu.dot_dimension_numbers<[1], [0], [0], [1], [0, 0, 1, 1], [], []>} : vector<8x128xf32>, vector<128x128xf32>, vector<8x128xf32> -> vector<8x128xf32>
      %68 = arith.addf %65, %67 : vector<8x128xf32>
      %c0_23 = arith.constant 0 : index
      %c0_24 = arith.constant 0 : index
      %69 = vector.load %arg7[%c0_23, %c0_24] : memref<8x128xf32, #tpu.memory_space<vmem>>, vector<8x128xf32>
      tpu.vector_store %arg7[%c0_23, %c0_24], %68 {strides = array<i32>} : memref<8x128xf32, #tpu.memory_space<vmem>>, vector<8x128xf32>,
    } else {
    }
    return
  }
  func.func @transform_0(%arg0: i32, %arg1: i32) -> (i32, i32) {
    %c0_i32 = arith.constant 0 : i32
    return %arg0, %arg1 : i32, i32
  }
  func.func @transform_1(%arg0: i32, %arg1: i32) -> (i32, i32) {
    %c0_i32 = arith.constant 0 : i32
    %c0_i32_0 = arith.constant 0 : i32
    %c0_i32_1 = arith.constant 0 : i32
    return %c0_i32, %c0_i32_0 : i32, i32
  }
  func.func @transform_2(%arg0: i32, %arg1: i32) -> (i32, i32) {
    %c0_i32 = arith.constant 0 : i32
    %c0_i32_0 = arith.constant 0 : i32
    return %c0_i32, %arg1 : i32, i32
  }
  func.func @transform_3(%arg0: i32, %arg1: i32) -> (i32, i32) {
    %c0_i32 = arith.constant 0 : i32
    %c0_i32_0 = arith.constant 0 : i32
    return %c0_i32, %arg1 : i32, i32
  }
  func.func @transform_4(%arg0: i32, %arg1: i32) -> (i32, i32) {
    %c0_i32 = arith.constant 0 : i32
    %c0_i32_0 = arith.constant 0 : i32
    return %arg0, %c0_i32 : i32, i32
  }
  func.func @transform_5(%arg0: i32, %arg1: i32) -> (i32, i32) {
    %c0_i32 = arith.constant 0 : i32
    %c0_i32_0 = arith.constant 0 : i32
    return %arg0, %c0_i32 : i32, i32
  }
}

</mosaic_0001>

<llo_original>
// kernel: tpu_custom_call.1
$region0: #{tpu_custom_call.1}
  #allocation0 [shape = 'u32[]', space=smem, size = 0x4, offset = 0x4, fixed_abs, tag = 'smem constant byte address 0x4 - core index']
  #allocation1 [shape = 'u32[144,128]{1,0:T(1,128)}', space=vmem, size = 0x12000, scoped, tag = 'internal scratch']
  #allocation2 [shape = 'f32[128,128]{1,0:T(8,128)}', space=vmem, size = 0x10000, scoped, tag = 'scratch operand']
  %s0 = inlined_call_operand.hbm [shape: f32[128,128], index: 0, kind: input, shape index: {}]
  %s1 = inlined_call_operand.hbm [shape: f32[128,128], index: 1, kind: input, shape index: {}]
  %s2 = inlined_call_operand.vmem [shape: f32[2,128], index: 2, kind: input, shape index: {}]
  %s3 = inlined_call_operand.vmem [shape: f32[2,128], index: 3, kind: input, shape index: {}]
  %s4 = inlined_call_operand.hbm [shape: f32[128,128], index: 4, kind: output, shape index: {0}]
  %s5 = inlined_call_operand.hbm [shape: f32[8,128], index: 5, kind: output, shape index: {1}]
  %6 = xla_tuple %s4, %s5
  %s7 = sld [smem:[#allocation0]]
  $region50: #{tpu_custom_call.1} parent=0
    _
  %s9 = ssub.s32 1, %s7
  %s10 = scalar_select 0, %s9, %s7
  $region1: #{tpu_custom_call.1} parent=0
    #allocation3 [shape = 'u8[65536]{0}', space=vmem, size = 0x10000, scoped, tag = 'input window, operand 0, single buffered']
    #allocation4 [shape = 's32[1]{0}', space=sflag, size = 0x4, scoped, tag = 'scoped memory for tpu_custom_call.1']
    #allocation5 [shape = 's32[1]{0}', space=sflag, size = 0x4, scoped, tag = 'scoped memory for tpu_custom_call.1']
    #allocation6 [shape = 'u8[65536]{0}', space=vmem, size = 0x10000, scoped, tag = 'input window, operand 1, single buffered']
    #allocation7 [shape = 's32[1]{0}', space=sflag, size = 0x4, scoped, tag = 'scoped memory for tpu_custom_call.1']
    #allocation8 [shape = 'u8[65536]{0}', space=vmem, size = 0x10000, scoped, tag = 'output window, operand 0, single buffered']
    #allocation9 [shape = 'u8[4096]{0}', space=vmem, size = 0x1000, scoped, tag = 'output window, operand 1, single buffered']
    #allocation10 [shape = 's32[1]{0}', space=sflag, size = 0x4, scoped, tag = 'scoped memory for tpu_custom_call.1']
    %11 = vsyncpa [#allocation4], 0
    %12 = vsyncpa [#allocation7], 0
    %13 = vsyncpa [#allocation5], 0
    %14 = vsyncpa [#allocation10], 0
    // Predicated region
    $region2: #{tpu_custom_call.1} parent=1 // pred_check
      _
    $region3: #{tpu_custom_call.1} parent=1 // pred_check_branch
      %16 = sbr.rel (0) target = $region5
    $region4: #{tpu_custom_call.1} parent=1 // pred_region
      %s18 = ssub.s32 2048, 2048
      %19 = vsyncadd [#allocation4], %s18
      %s20 = sshll.u32 [#allocation3], 4
      %s21 = int_to_ptr.vmem [resolvable:$true] %s20
      %26 = dma.hbm_to_vmem [thread:$0]  %s0, 2048, %s21, [#allocation4], 128, 128, 8
    $region5: #{tpu_custom_call.1} parent=1 // pred_fallthru
      _
    // Predicated region
    $region6: #{tpu_custom_call.1} parent=1 // pred_check
      _
    $region7: #{tpu_custom_call.1} parent=1 // pred_check_branch
      %28 = sbr.rel (0) target = $region9
    $region8: #{tpu_custom_call.1} parent=1 // pred_region
      %s30 = ssub.s32 2048, 2048
      %31 = vsyncadd [#allocation7], %s30
      %s32 = sshll.u32 [#allocation6], 4
      %s33 = int_to_ptr.vmem [resolvable:$true] %s32
      %38 = dma.hbm_to_vmem [thread:$0]  %s1, 2048, %s33, [#allocation7], 128, 128, 8
    $region9: #{tpu_custom_call.1} parent=1 // pred_fallthru
      _
    // Predicated region
    $region10: #{tpu_custom_call.1} parent=1 // pred_check
      _
    $region11: #{tpu_custom_call.1} parent=1 // pred_check_branch
      %40 = sbr.rel (0) target = $region13
    $region12: #{tpu_custom_call.1} parent=1 // pred_region
      _
    $region13: #{tpu_custom_call.1} parent=1 // pred_fallthru
      _
    // Predicated region
    $region14: #{tpu_custom_call.1} parent=1 // pred_check
      _
    $region15: #{tpu_custom_call.1} parent=1 // pred_check_branch
      %42 = sbr.rel (0) target = $region17
    $region16: #{tpu_custom_call.1} parent=1 // pred_region
      _
    $region17: #{tpu_custom_call.1} parent=1 // pred_fallthru
      _
    // Predicated region
    $region18: #{tpu_custom_call.1} parent=1 // pred_check
      _
    $region19: #{tpu_custom_call.1} parent=1 // pred_check_branch
      %44 = sbr.rel (0) target = $region21
    $region20: #{tpu_custom_call.1} parent=1 // pred_region
      %45 = dma.done [#allocation4], 2048
    $region21: #{tpu_custom_call.1} parent=1 // pred_fallthru
      _
    // Predicated region
    $region22: #{tpu_custom_call.1} parent=1 // pred_check
      _
    $region23: #{tpu_custom_call.1} parent=1 // pred_check_branch
      %47 = sbr.rel (0) target = $region25
    $region24: #{tpu_custom_call.1} parent=1 // pred_region
      %48 = dma.done [#allocation7], 2048
    $region25: #{tpu_custom_call.1} parent=1 // pred_fallthru
      _
    %v49 = vld [vmem:[#allocation3] sm:$0xff]
    %v50 = vld [vmem:[#allocation3 + $0x8] sm:$0xff]
    %v51 = vld [vmem:[#allocation3 + $0x10] sm:$0xff]
    %v52 = vld [vmem:[#allocation3 + $0x18] sm:$0xff]
    %v53 = vld [vmem:[#allocation3 + $0x20] sm:$0xff]
    %v54 = vld [vmem:[#allocation3 + $0x28] sm:$0xff]
    %v55 = vld [vmem:[#allocation3 + $0x30] sm:$0xff]
    %v56 = vld [vmem:[#allocation3 + $0x38] sm:$0xff]
    %v57 = vld [vmem:[#allocation3 + $0x40] sm:$0xff]
    %v58 = vld [vmem:[#allocation3 + $0x48] sm:$0xff]
    %v59 = vld [vmem:[#allocation3 + $0x50] sm:$0xff]
    %v60 = vld [vmem:[#allocation3 + $0x58] sm:$0xff]
    %v61 = vld [vmem:[#allocation3 + $0x60] sm:$0xff]
    %v62 = vld [vmem:[#allocation3 + $0x68] sm:$0xff]
    %v63 = vld [vmem:[#allocation3 + $0x70] sm:$0xff]
    %v64 = vld [vmem:[#allocation3 + $0x78] sm:$0xff]
    %p65 = scmp.eq.s32.totalorder 0, 0
    // Predicated region
    $region26: #{tpu_custom_call.1} parent=1 // pred_check
      %p66 = pneg %p65
    $region27: #{tpu_custom_call.1} parent=1 // pred_check_branch
      %68 = sbr.rel (%p66) target = $region29
    $region28: #{tpu_custom_call.1} parent=1 // pred_region
      %69 = vst [vmem:[#allocation2] sm:$0xff] 0.0
      %70 = vst [vmem:[#allocation2 + $0x8] sm:$0xff] 0.0
      %71 = vst [vmem:[#allocation2 + $0x10] sm:$0xff] 0.0
      %72 = vst [vmem:[#allocation2 + $0x18] sm:$0xff] 0.0
      %73 = vst [vmem:[#allocation2 + $0x20] sm:$0xff] 0.0
      %74 = vst [vmem:[#allocation2 + $0x28] sm:$0xff] 0.0
      %75 = vst [vmem:[#allocation2 + $0x30] sm:$0xff] 0.0
      %76 = vst [vmem:[#allocation2 + $0x38] sm:$0xff] 0.0
      %77 = vst [vmem:[#allocation2 + $0x40] sm:$0xff] 0.0
      %78 = vst [vmem:[#allocation2 + $0x48] sm:$0xff] 0.0
      %79 = vst [vmem:[#allocation2 + $0x50] sm:$0xff] 0.0
      %80 = vst [vmem:[#allocation2 + $0x58] sm:$0xff] 0.0
      %81 = vst [vmem:[#allocation2 + $0x60] sm:$0xff] 0.0
      %82 = vst [vmem:[#allocation2 + $0x68] sm:$0xff] 0.0
      %83 = vst [vmem:[#allocation2 + $0x70] sm:$0xff] 0.0
      %84 = vst [vmem:[#allocation2 + $0x78] sm:$0xff] 0.0
    $region29: #{tpu_custom_call.1} parent=1 // pred_fallthru
      _
    %v85 = vld [vmem:[#allocation6] sm:$0xff]
    %v86 = vld [vmem:[#allocation6 + $0x8] sm:$0xff]
    %v87 = vld [vmem:[#allocation6 + $0x10] sm:$0xff]
    %v88 = vld [vmem:[#allocation6 + $0x18] sm:$0xff]
    %v89 = vld [vmem:[#allocation6 + $0x20] sm:$0xff]
    %v90 = vld [vmem:[#allocation6 + $0x28] sm:$0xff]
    %v91 = vld [vmem:[#allocation6 + $0x30] sm:$0xff]
    %v92 = vld [vmem:[#allocation6 + $0x38] sm:$0xff]
    %v93 = vld [vmem:[#allocation6 + $0x40] sm:$0xff]
    %v94 = vld [vmem:[#allocation6 + $0x48] sm:$0xff]
    %v95 = vld [vmem:[#allocation6 + $0x50] sm:$0xff]
    %v96 = vld [vmem:[#allocation6 + $0x58] sm:$0xff]
    %v97 = vld [vmem:[#allocation6 + $0x60] sm:$0xff]
    %v98 = vld [vmem:[#allocation6 + $0x68] sm:$0xff]
    %v99 = vld [vmem:[#allocation6 + $0x70] sm:$0xff]
    %v100 = vld [vmem:[#allocation6 + $0x78] sm:$0xff]
    %v101 = vld [vmem:[#allocation2] sm:$0xff]
    %v102 = vld [vmem:[#allocation2 + $0x8] sm:$0xff]
    %v103 = vld [vmem:[#allocation2 + $0x10] sm:$0xff]
    %v104 = vld [vmem:[#allocation2 + $0x18] sm:$0xff]
    %v105 = vld [vmem:[#allocation2 + $0x20] sm:$0xff]
    %v106 = vld [vmem:[#allocation2 + $0x28] sm:$0xff]
    %v107 = vld [vmem:[#allocation2 + $0x30] sm:$0xff]
    %v108 = vld [vmem:[#allocation2 + $0x38] sm:$0xff]
    %v109 = vld [vmem:[#allocation2 + $0x40] sm:$0xff]
    %v110 = vld [vmem:[#allocation2 + $0x48] sm:$0xff]
    %v111 = vld [vmem:[#allocation2 + $0x50] sm:$0xff]
    %v112 = vld [vmem:[#allocation2 + $0x58] sm:$0xff]
    %v113 = vld [vmem:[#allocation2 + $0x60] sm:$0xff]
    %v114 = vld [vmem:[#allocation2 + $0x68] sm:$0xff]
    %v115 = vld [vmem:[#allocation2 + $0x70] sm:$0xff]
    %v116 = vld [vmem:[#allocation2 + $0x78] sm:$0xff]
    %117 = vmatprep.subr.mxu0 0.0
    %118 = vmatpush1.msra.mxu0 %v85
    %119 = vmatprep.subr.mxu0 0.0
    %120 = vmatpush1.msra.mxu0 %v86
    %121 = vmatprep.subr.mxu0 0.0
    %122 = vmatpush1.msra.mxu0 %v87
    %123 = vmatprep.subr.mxu0 0.0
    %124 = vmatpush1.msra.mxu0 %v88
    %125 = vmatprep.subr.mxu0 0.0
    %126 = vmatpush1.msra.mxu0 %v89
    %127 = vmatprep.subr.mxu0 0.0
    %128 = vmatpush1.msra.mxu0 %v90
    %129 = vmatprep.subr.mxu0 0.0
    %130 = vmatpush1.msra.mxu0 %v91
    %131 = vmatprep.subr.mxu0 0.0
    %132 = vmatpush1.msra.mxu0 %v92
    %133 = vmatprep.subr.mxu0 0.0
    %134 = vmatpush1.msra.mxu0 %v93
    %135 = vmatprep.subr.mxu0 0.0
    %136 = vmatpush1.msra.mxu0 %v94
    %137 = vmatprep.subr.mxu0 0.0
    %138 = vmatpush1.msra.mxu0 %v95
    %139 = vmatprep.subr.mxu0 0.0
    %140 = vmatpush1.msra.mxu0 %v96
    %141 = vmatprep.subr.mxu0 0.0
    %142 = vmatpush1.msra.mxu0 %v97
    %143 = vmatprep.subr.mxu0 0.0
    %144 = vmatpush1.msra.mxu0 %v98
    %145 = vmatprep.subr.mxu0 0.0
    %146 = vmatpush1.msra.mxu0 %v99
    %147 = vmatprep.subr.mxu0 0.0
    %148 = vmatpush1.msra.mxu0 %v100
    %149 = vmatprep.subr.mxu0 0.0
    %150 = vmatpush1.msra.mxu0 0.0
    %151 = vmatprep.subr.mxu0 0.0
    %152 = vmatpush1.msra.mxu0 0.0
    %153 = vmatprep.subr.mxu0 0.0
    %154 = vmatpush1.msra.mxu0 0.0
    %155 = vmatprep.subr.mxu0 0.0
    %156 = vmatpush1.msra.mxu0 0.0
    %157 = vmatprep.subr.mxu0 0.0
    %158 = vmatpush1.msra.mxu0 0.0
    %159 = vmatprep.subr.mxu0 0.0
    %160 = vmatpush1.msra.mxu0 0.0
    %161 = vmatprep.subr.mxu0 0.0
    %162 = vmatpush1.msra.mxu0 0.0
    %163 = vmatprep.subr.mxu0 0.0
    %164 = vmatpush1.msra.mxu0 0.0
    %165 = vmatprep.subr.mxu0 0.0
    %166 = vmatpush1.msra.mxu0 0.0
    %167 = vmatprep.subr.mxu0 0.0
    %168 = vmatpush1.msra.mxu0 0.0
    %169 = vmatprep.subr.mxu0 0.0
    %170 = vmatpush1.msra.mxu0 0.0
    %171 = vmatprep.subr.mxu0 0.0
    %172 = vmatpush1.msra.mxu0 0.0
    %173 = vmatprep.subr.mxu0 0.0
    %174 = vmatpush1.msra.mxu0 0.0
    %175 = vmatprep.subr.mxu0 0.0
    %176 = vmatpush1.msra.mxu0 0.0
    %177 = vmatprep.subr.mxu0 0.0
    %178 = vmatpush1.msra.mxu0 0.0
    %179 = vmatprep.subr.mxu0 0.0
    %180 = vmatpush1.msra.mxu0 0.0
    %181 = vmatprep.mubr.f32.mxu0 0.0
    %182 = vmatmul.mubr.f32.gmra.mrb[0].mxu0 %v49
    %v183 = vpop.f32.mrb[0].mxu0
    %v184 = vadd.f32 0.0, %v183
    %v185 = vpop.f32.mrb[0].mxu0
    %186 = vmatprep.mubr.f32.mxu0 0.0
    %187 = vmatmul.mubr.f32.gmra.mrb[0].mxu0 %v50
    %v188 = vpop.f32.mrb[0].mxu0
    %v189 = vadd.f32 0.0, %v188
    %v190 = vpop.f32.mrb[0].mxu0
    %191 = vmatprep.mubr.f32.mxu0 0.0
    %192 = vmatmul.mubr.f32.gmra.mrb[0].mxu0 %v51
    %v193 = vpop.f32.mrb[0].mxu0
    %v194 = vadd.f32 0.0, %v193
    %v195 = vpop.f32.mrb[0].mxu0
    %196 = vmatprep.mubr.f32.mxu0 0.0
    %197 = vmatmul.mubr.f32.gmra.mrb[0].mxu0 %v52
    %v198 = vpop.f32.mrb[0].mxu0
    %v199 = vadd.f32 0.0, %v198
    %v200 = vpop.f32.mrb[0].mxu0
    %201 = vmatprep.mubr.f32.mxu0 0.0
    %202 = vmatmul.mubr.f32.gmra.mrb[0].mxu0 %v53
    %v203 = vpop.f32.mrb[0].mxu0
    %v204 = vadd.f32 0.0, %v203
    %v205 = vpop.f32.mrb[0].mxu0
    %206 = vmatprep.mubr.f32.mxu0 0.0
    %207 = vmatmul.mubr.f32.gmra.mrb[0].mxu0 %v54
    %v208 = vpop.f32.mrb[0].mxu0
    %v209 = vadd.f32 0.0, %v208
    %v210 = vpop.f32.mrb[0].mxu0
    %211 = vmatprep.mubr.f32.mxu0 0.0
    %212 = vmatmul.mubr.f32.gmra.mrb[0].mxu0 %v55
    %v213 = vpop.f32.mrb[0].mxu0
    %v214 = vadd.f32 0.0, %v213
    %v215 = vpop.f32.mrb[0].mxu0
    %216 = vmatprep.mubr.f32.mxu0 0.0
    %217 = vmatmul.mubr.f32.gmra.mrb[0].mxu0 %v56
    %v218 = vpop.f32.mrb[0].mxu0
    %v219 = vadd.f32 0.0, %v218
    %v220 = vpop.f32.mrb[0].mxu0
    %221 = vmatprep.mubr.f32.mxu0 0.0
    %222 = vmatmul.mubr.f32.gmra.mrb[0].mxu0 %v57
    %v223 = vpop.f32.mrb[0].mxu0
    %v224 = vadd.f32 0.0, %v223
    %v225 = vpop.f32.mrb[0].mxu0
    %226 = vmatprep.mubr.f32.mxu0 0.0
    %227 = vmatmul.mubr.f32.gmra.mrb[0].mxu0 %v58
    %v228 = vpop.f32.mrb[0].mxu0
    %v229 = vadd.f32 0.0, %v228
    %v230 = vpop.f32.mrb[0].mxu0
    %231 = vmatprep.mubr.f32.mxu0 0.0
    %232 = vmatmul.mubr.f32.gmra.mrb[0].mxu0 %v59
    %v233 = vpop.f32.mrb[0].mxu0
    %v234 = vadd.f32 0.0, %v233
    %v235 = vpop.f32.mrb[0].mxu0
    %236 = vmatprep.mubr.f32.mxu0 0.0
    %237 = vmatmul.mubr.f32.gmra.mrb[0].mxu0 %v60
    %v238 = vpop.f32.mrb[0].mxu0
    %v239 = vadd.f32 0.0, %v238
    %v240 = vpop.f32.mrb[0].mxu0
    %241 = vmatprep.mubr.f32.mxu0 0.0
    %242 = vmatmul.mubr.f32.gmra.mrb[0].mxu0 %v61
    %v243 = vpop.f32.mrb[0].mxu0
    %v244 = vadd.f32 0.0, %v243
    %v245 = vpop.f32.mrb[0].mxu0
    %246 = vmatprep.mubr.f32.mxu0 0.0
    %247 = vmatmul.mubr.f32.gmra.mrb[0].mxu0 %v62
    %v248 = vpop.f32.mrb[0].mxu0
    %v249 = vadd.f32 0.0, %v248
    %v250 = vpop.f32.mrb[0].mxu0
    %251 = vmatprep.mubr.f32.mxu0 0.0
    %252 = vmatmul.mubr.f32.gmra.mrb[0].mxu0 %v63
    %v253 = vpop.f32.mrb[0].mxu0
    %v254 = vadd.f32 0.0, %v253
    %v255 = vpop.f32.mrb[0].mxu0
    %256 = vmatprep.mubr.f32.mxu0 0.0
    %257 = vmatmul.mubr.f32.gmra.mrb[0].mxu0 %v64
    %v258 = vpop.f32.mrb[0].mxu0
    %v259 = vadd.f32 0.0, %v258
    %v260 = vpop.f32.mrb[0].mxu0
    %261 = vdwg.mxu0
    %v262 = vadd.f32 %v101, %v184
    %v263 = vadd.f32 %v102, %v189
    %v264 = vadd.f32 %v103, %v194
    %v265 = vadd.f32 %v104, %v199
    %v266 = vadd.f32 %v105, %v204
    %v267 = vadd.f32 %v106, %v209
    %v268 = vadd.f32 %v107, %v214
    %v269 = vadd.f32 %v108, %v219
    %v270 = vadd.f32 %v109, %v224
    %v271 = vadd.f32 %v110, %v229
    %v272 = vadd.f32 %v111, %v234
    %v273 = vadd.f32 %v112, %v239
    %v274 = vadd.f32 %v113, %v244
    %v275 = vadd.f32 %v114, %v249
    %v276 = vadd.f32 %v115, %v254
    %v277 = vadd.f32 %v116, %v259
    %278 = vst [vmem:[#allocation2] sm:$0xff] %v262
    %279 = vst [vmem:[#allocation2 + $0x8] sm:$0xff] %v263
    %280 = vst [vmem:[#allocation2 + $0x10] sm:$0xff] %v264
    %281 = vst [vmem:[#allocation2 + $0x18] sm:$0xff] %v265
    %282 = vst [vmem:[#allocation2 + $0x20] sm:$0xff] %v266
    %283 = vst [vmem:[#allocation2 + $0x28] sm:$0xff] %v267
    %284 = vst [vmem:[#allocation2 + $0x30] sm:$0xff] %v268
    %285 = vst [vmem:[#allocation2 + $0x38] sm:$0xff] %v269
    %286 = vst [vmem:[#allocation2 + $0x40] sm:$0xff] %v270
    %287 = vst [vmem:[#allocation2 + $0x48] sm:$0xff] %v271
    %288 = vst [vmem:[#allocation2 + $0x50] sm:$0xff] %v272
    %289 = vst [vmem:[#allocation2 + $0x58] sm:$0xff] %v273
    %290 = vst [vmem:[#allocation2 + $0x60] sm:$0xff] %v274
    %291 = vst [vmem:[#allocation2 + $0x68] sm:$0xff] %v275
    %292 = vst [vmem:[#allocation2 + $0x70] sm:$0xff] %v276
    %293 = vst [vmem:[#allocation2 + $0x78] sm:$0xff] %v277
    // Predicated region
    $region30: #{tpu_custom_call.1} parent=1 // pred_check
      %p294 = pneg %p65
    $region31: #{tpu_custom_call.1} parent=1 // pred_check_branch
      %296 = sbr.rel (%p294) target = $region33
    $region32: #{tpu_custom_call.1} parent=1 // pred_region
      %v297 = vld [vmem:[#allocation2] sm:$0xff]
      %v298 = vld [vmem:[#allocation2 + $0x8] sm:$0xff]
      %v299 = vld [vmem:[#allocation2 + $0x10] sm:$0xff]
      %v300 = vld [vmem:[#allocation2 + $0x18] sm:$0xff]
      %v301 = vld [vmem:[#allocation2 + $0x20] sm:$0xff]
      %v302 = vld [vmem:[#allocation2 + $0x28] sm:$0xff]
      %v303 = vld [vmem:[#allocation2 + $0x30] sm:$0xff]
      %v304 = vld [vmem:[#allocation2 + $0x38] sm:$0xff]
      %v305 = vld [vmem:[#allocation2 + $0x40] sm:$0xff]
      %v306 = vld [vmem:[#allocation2 + $0x48] sm:$0xff]
      %v307 = vld [vmem:[#allocation2 + $0x50] sm:$0xff]
      %v308 = vld [vmem:[#allocation2 + $0x58] sm:$0xff]
      %v309 = vld [vmem:[#allocation2 + $0x60] sm:$0xff]
      %v310 = vld [vmem:[#allocation2 + $0x68] sm:$0xff]
      %v311 = vld [vmem:[#allocation2 + $0x70] sm:$0xff]
      %v312 = vld [vmem:[#allocation2 + $0x78] sm:$0xff]
      %313 = vst [vmem:[#allocation8] sm:$0xff] %v297
      %314 = vst [vmem:[#allocation8 + $0x8] sm:$0xff] %v298
      %315 = vst [vmem:[#allocation8 + $0x10] sm:$0xff] %v299
      %316 = vst [vmem:[#allocation8 + $0x18] sm:$0xff] %v300
      %317 = vst [vmem:[#allocation8 + $0x20] sm:$0xff] %v301
      %318 = vst [vmem:[#allocation8 + $0x28] sm:$0xff] %v302
      %319 = vst [vmem:[#allocation8 + $0x30] sm:$0xff] %v303
      %320 = vst [vmem:[#allocation8 + $0x38] sm:$0xff] %v304
      %321 = vst [vmem:[#allocation8 + $0x40] sm:$0xff] %v305
      %322 = vst [vmem:[#allocation8 + $0x48] sm:$0xff] %v306
      %323 = vst [vmem:[#allocation8 + $0x50] sm:$0xff] %v307
      %324 = vst [vmem:[#allocation8 + $0x58] sm:$0xff] %v308
      %325 = vst [vmem:[#allocation8 + $0x60] sm:$0xff] %v309
      %326 = vst [vmem:[#allocation8 + $0x68] sm:$0xff] %v310
      %327 = vst [vmem:[#allocation8 + $0x70] sm:$0xff] %v311
      %328 = vst [vmem:[#allocation8 + $0x78] sm:$0xff] %v312
      %s329 = smul.u32 0, 128
      %v330 = vlaneseq
      %v331 = vand.u32 %v330, 127
      %v332 = vstv %s329
      %v333 = vadd.s32 %v332, %v331
      %vm334 = vcmp.lt.s32.totalorder %v333, 128
      %vm335 = vcmp.lt.s32.totalorder %v333, 64
      %vm336 = vmand %vm335, %vm334
      %v337 = vsel %vm336, 1, 0
      %v338 = vcvt.s32.f32 %v337
      %vm339 = vcmp.ge.s32.totalorder %v333, 64
      %vm340 = vmand %vm339, %vm334
      %v341 = vsel %vm340, 1, 0
      %v342 = vcvt.s32.f32 %v341
      %v343 = vlaneseq
      %v344 = vshrl.u32 %v343, 7
      %vm345 = vcmp.eq.s32.totalorder %v344, 0
      %v346 = vsel %vm345, 1, 0
      %vm347 = vcmp.eq.s32.totalorder %v346, 1
      %v348 = vsel %vm347, %v338, 0.0
      %vm349 = vcmp.eq.s32.totalorder %v344, 1
      %v350 = vsel %vm349, 1, 0
      %vm351 = vcmp.eq.s32.totalorder %v350, 1
      %v352 = vsel %vm351, %v342, 0.0
      %v353 = vadd.f32 %v348, %v352
      %vm354 = vcmp.eq.s32.totalorder %v344, 2
      %v355 = vsel %vm354, 1, 0
      %vm356 = vcmp.eq.s32.totalorder %v355, 1
      %v357 = vsel %vm356, %v338, 0.0
      %vm358 = vcmp.eq.s32.totalorder %v344, 3
      %v359 = vsel %vm358, 1, 0
      %vm360 = vcmp.eq.s32.totalorder %v359, 1
      %v361 = vsel %vm360, %v342, 0.0
      %v362 = vadd.f32 %v357, %v361
      %v363 = vmul.f32 %v297, %v297
      %v364 = vmul.f32 %v298, %v298
      %v365 = vmul.f32 %v299, %v299
      %v366 = vmul.f32 %v300, %v300
      %v367 = vmul.f32 %v301, %v301
      %v368 = vmul.f32 %v302, %v302
      %v369 = vmul.f32 %v303, %v303
      %v370 = vmul.f32 %v304, %v304
      %v371 = vmul.f32 %v305, %v305
      %v372 = vmul.f32 %v306, %v306
      %v373 = vmul.f32 %v307, %v307
      %v374 = vmul.f32 %v308, %v308
      %v375 = vmul.f32 %v309, %v309
      %v376 = vmul.f32 %v310, %v310
      %v377 = vmul.f32 %v311, %v311
      %v378 = vmul.f32 %v312, %v312
      %379 = vmatprep.subr.mxu0 0.0
      %380 = vmatpush1.msra.mxu0 %v363
      %381 = vmatprep.subr.mxu0 0.0
      %382 = vmatpush1.msra.mxu0 %v364
      %383 = vmatprep.subr.mxu0 0.0
      %384 = vmatpush1.msra.mxu0 %v365
      %385 = vmatprep.subr.mxu0 0.0
      %386 = vmatpush1.msra.mxu0 %v366
      %387 = vmatprep.subr.mxu0 0.0
      %388 = vmatpush1.msra.mxu0 %v367
      %389 = vmatprep.subr.mxu0 0.0
      %390 = vmatpush1.msra.mxu0 %v368
      %391 = vmatprep.subr.mxu0 0.0
      %392 = vmatpush1.msra.mxu0 %v369
      %393 = vmatprep.subr.mxu0 0.0
      %394 = vmatpush1.msra.mxu0 %v370
      %395 = vmatprep.subr.mxu0 0.0
      %396 = vmatpush1.msra.mxu0 %v371
      %397 = vmatprep.subr.mxu0 0.0
      %398 = vmatpush1.msra.mxu0 %v372
      %399 = vmatprep.subr.mxu0 0.0
      %400 = vmatpush1.msra.mxu0 %v373
      %401 = vmatprep.subr.mxu0 0.0
      %402 = vmatpush1.msra.mxu0 %v374
      %403 = vmatprep.subr.mxu0 0.0
      %404 = vmatpush1.msra.mxu0 %v375
      %405 = vmatprep.subr.mxu0 0.0
      %406 = vmatpush1.msra.mxu0 %v376
      %407 = vmatprep.subr.mxu0 0.0
      %408 = vmatpush1.msra.mxu0 %v377
      %409 = vmatprep.subr.mxu0 0.0
      %410 = vmatpush1.msra.mxu0 %v378
      %411 = vmatprep.subr.mxu0 0.0
      %412 = vmatpush1.msra.mxu0 0.0
      %413 = vmatprep.subr.mxu0 0.0
      %414 = vmatpush1.msra.mxu0 0.0
      %415 = vmatprep.subr.mxu0 0.0
      %416 = vmatpush1.msra.mxu0 0.0
      %417 = vmatprep.subr.mxu0 0.0
      %418 = vmatpush1.msra.mxu0 0.0
      %419 = vmatprep.subr.mxu0 0.0
      %420 = vmatpush1.msra.mxu0 0.0
      %421 = vmatprep.subr.mxu0 0.0
      %422 = vmatpush1.msra.mxu0 0.0
      %423 = vmatprep.subr.mxu0 0.0
      %424 = vmatpush1.msra.mxu0 0.0
      %425 = vmatprep.subr.mxu0 0.0
      %426 = vmatpush1.msra.mxu0 0.0
      %427 = vmatprep.subr.mxu0 0.0
      %428 = vmatpush1.msra.mxu0 0.0
      %429 = vmatprep.subr.mxu0 0.0
      %430 = vmatpush1.msra.mxu0 0.0
      %431 = vmatprep.subr.mxu0 0.0
      %432 = vmatpush1.msra.mxu0 0.0
      %433 = vmatprep.subr.mxu0 0.0
      %434 = vmatpush1.msra.mxu0 0.0
      %435 = vmatprep.subr.mxu0 0.0
      %436 = vmatpush1.msra.mxu0 0.0
      %437 = vmatprep.subr.mxu0 0.0
      %438 = vmatpush1.msra.mxu0 0.0
      %439 = vmatprep.subr.mxu0 0.0
      %440 = vmatpush1.msra.mxu0 0.0
      %441 = vmatprep.subr.mxu0 0.0
      %442 = vmatpush1.msra.mxu0 0.0
      %443 = vmatprep.mubr.f32.mxu0 0.0
      %444 = vmatmul.mubr.f32.gmra.mrb[0].mxu0 %v362
      %v445 = vpop.f32.mrb[0].mxu0
      %v446 = vadd.f32 0.0, %v445
      %v447 = vpop.f32.mrb[0].mxu0
      %448 = vdwg.mxu0
      %449 = vmatprep.subr.mxu0 0.0
      %450 = vmatpush1.msra.mxu0 %v297
      %451 = vmatprep.subr.mxu0 0.0
      %452 = vmatpush1.msra.mxu0 %v298
      %453 = vmatprep.subr.mxu0 0.0
      %454 = vmatpush1.msra.mxu0 %v299
      %455 = vmatprep.subr.mxu0 0.0
      %456 = vmatpush1.msra.mxu0 %v300
      %457 = vmatprep.subr.mxu0 0.0
      %458 = vmatpush1.msra.mxu0 %v301
      %459 = vmatprep.subr.mxu0 0.0
      %460 = vmatpush1.msra.mxu0 %v302
      %461 = vmatprep.subr.mxu0 0.0
      %462 = vmatpush1.msra.mxu0 %v303
      %463 = vmatprep.subr.mxu0 0.0
      %464 = vmatpush1.msra.mxu0 %v304
      %465 = vmatprep.subr.mxu0 0.0
      %466 = vmatpush1.msra.mxu0 %v305
      %467 = vmatprep.subr.mxu0 0.0
      %468 = vmatpush1.msra.mxu0 %v306
      %469 = vmatprep.subr.mxu0 0.0
      %470 = vmatpush1.msra.mxu0 %v307
      %471 = vmatprep.subr.mxu0 0.0
      %472 = vmatpush1.msra.mxu0 %v308
      %473 = vmatprep.subr.mxu0 0.0
      %474 = vmatpush1.msra.mxu0 %v309
      %475 = vmatprep.subr.mxu0 0.0
      %476 = vmatpush1.msra.mxu0 %v310
      %477 = vmatprep.subr.mxu0 0.0
      %478 = vmatpush1.msra.mxu0 %v311
      %479 = vmatprep.subr.mxu0 0.0
      %480 = vmatpush1.msra.mxu0 %v312
      %481 = vmatprep.subr.mxu0 0.0
      %482 = vmatpush1.msra.mxu0 0.0
      %483 = vmatprep.subr.mxu0 0.0
      %484 = vmatpush1.msra.mxu0 0.0
      %485 = vmatprep.subr.mxu0 0.0
      %486 = vmatpush1.msra.mxu0 0.0
      %487 = vmatprep.subr.mxu0 0.0
      %488 = vmatpush1.msra.mxu0 0.0
      %489 = vmatprep.subr.mxu0 0.0
      %490 = vmatpush1.msra.mxu0 0.0
      %491 = vmatprep.subr.mxu0 0.0
      %492 = vmatpush1.msra.mxu0 0.0
      %493 = vmatprep.subr.mxu0 0.0
      %494 = vmatpush1.msra.mxu0 0.0
      %495 = vmatprep.subr.mxu0 0.0
      %496 = vmatpush1.msra.mxu0 0.0
      %497 = vmatprep.subr.mxu0 0.0
      %498 = vmatpush1.msra.mxu0 0.0
      %499 = vmatprep.subr.mxu0 0.0
      %500 = vmatpush1.msra.mxu0 0.0
      %501 = vmatprep.subr.mxu0 0.0
      %502 = vmatpush1.msra.mxu0 0.0
      %503 = vmatprep.subr.mxu0 0.0
      %504 = vmatpush1.msra.mxu0 0.0
      %505 = vmatprep.subr.mxu0 0.0
      %506 = vmatpush1.msra.mxu0 0.0
      %507 = vmatprep.subr.mxu0 0.0
      %508 = vmatpush1.msra.mxu0 0.0
      %509 = vmatprep.subr.mxu0 0.0
      %510 = vmatpush1.msra.mxu0 0.0
      %511 = vmatprep.subr.mxu0 0.0
      %512 = vmatpush1.msra.mxu0 0.0
      %513 = vmatprep.mubr.f32.mxu0 0.0
      %514 = vmatmul.mubr.f32.gmra.mrb[0].mxu0 %v353
      %v515 = vpop.f32.mrb[0].mxu0
      %v516 = vadd.f32 %v446, %v515
      %v517 = vpop.f32.mrb[0].mxu0
      %518 = vdwg.mxu0
      %519 = vst [vmem:[#allocation9] sm:$0xff] %v516
    $region33: #{tpu_custom_call.1} parent=1 // pred_fallthru
      _
    // Predicated region
    $region34: #{tpu_custom_call.1} parent=1 // pred_check
      _
    $region35: #{tpu_custom_call.1} parent=1 // pred_check_branch
      %521 = sbr.rel (0) target = $region37
    $region36: #{tpu_custom_call.1} parent=1 // pred_region
      %s523 = ssub.s32 2048, 2048
      %524 = vsyncadd [#allocation5], %s523
      %s525 = sshll.u32 [#allocation8], 4
      %s526 = int_to_ptr.vmem [resolvable:$true] %s525
      %531 = dma.vmem_to_hbm [thread:$0]  %s526, 2048, %s4, [#allocation5], 128, 128, 8
    $region37: #{tpu_custom_call.1} parent=1 // pred_fallthru
      _
    // Predicated region
    $region38: #{tpu_custom_call.1} parent=1 // pred_check
      _
    $region39: #{tpu_custom_call.1} parent=1 // pred_check_branch
      %533 = sbr.rel (0) target = $region41
    $region40: #{tpu_custom_call.1} parent=1 // pred_region
      %s535 = ssub.s32 128, 128
      %536 = vsyncadd [#allocation10], %s535
      %s538 = sshll.u32 [#allocation9], 4
      %s539 = int_to_ptr.vmem [resolvable:$true] %s538
      %541 = dma.vmem_to_hbm [thread:$0]  %s539, 128, %s5, [#allocation10]
    $region41: #{tpu_custom_call.1} parent=1 // pred_fallthru
      _
    // Predicated region
    $region42: #{tpu_custom_call.1} parent=1 // pred_check
      _
    $region43: #{tpu_custom_call.1} parent=1 // pred_check_branch
      %543 = sbr.rel (0) target = $region45
    $region44: #{tpu_custom_call.1} parent=1 // pred_region
      %544 = dma.done [#allocation5], 2048
    $region45: #{tpu_custom_call.1} parent=1 // pred_fallthru
      _
    // Predicated region
    $region46: #{tpu_custom_call.1} parent=1 // pred_check
      _
    $region47: #{tpu_custom_call.1} parent=1 // pred_check_branch
      %546 = sbr.rel (0) target = $region49
    $region48: #{tpu_custom_call.1} parent=1 // pred_region
      %547 = dma.done [#allocation10], 128
    $region49: #{tpu_custom_call.1} parent=1 // pred_fallthru
      _
    %548 = vsyncpa [#allocation4], 1
    %549 = vsyncpa [#allocation7], 1
    %550 = vsyncpa [#allocation5], 1
    %551 = vsyncpa [#allocation10], 1

</llo_original>
